<compile_context>
chip_gen: v7x
topology: tpu7x:2x2x1
jax: 0.10.0
libtpu: 0.0.40
codegen_flags: <defaults>
</compile_context>

<pallas_src>
import functools

import jax
import jax.numpy as jnp
import numpy as np
from jax.experimental import pallas as pl
from jax.experimental.pallas import tpu as pltpu


def _rnn_attn_kernel(x2_ref, h0_ref, wih_ref, whh_ref, brnn_ref,
                     wlin_ref, blin_ref, out_ref, xp_ref):
    # x2_ref   : (L*Bp, Ip)   time-major flattened, padded inputs
    # h0_ref   : (Bp, Hp)     initial hidden state (padded)
    # wih_ref  : (Ip, Hp)     W_ih^T (padded)
    # whh_ref  : (Hp, Hp)     W_hh^T (padded)
    # brnn_ref : (1, Hp)      b_ih + b_hh (padded)
    # wlin_ref : (Hp, Op)     W_lin^T (padded)
    # blin_ref : (1, Op)      b_lin (padded)
    # out_ref  : (P*Bp, Op)   ReLU(Linear(h_t)) for the last P timesteps
    # xp_ref   : VMEM scratch (L*Bp, Hp): input projections, overwritten by h_t
    Bp = h0_ref.shape[0]
    L = x2_ref.shape[0] // Bp
    P = out_ref.shape[0] // Bp

    # (1) Hoisted input projection for ALL timesteps: one MXU matmul, bias
    #     broadcast applied exactly once.
    xp_ref[...] = (
        jnp.dot(x2_ref[...], wih_ref[...], preferred_element_type=jnp.float32)
        + brnn_ref[...])

    # (2) Sequential recurrence: h_t = tanh(xp_t + h_{t-1} @ W_hh^T).
    #     h is carried in registers; h_t overwrites the consumed xp_t rows.
    def step(t, h_prev):
        base = pl.multiple_of(t * Bp, Bp)
        pre = xp_ref[pl.ds(base, Bp), :] + jnp.dot(
            h_prev, whh_ref[...], preferred_element_type=jnp.float32)
        h_new = jnp.tanh(pre)
        xp_ref[pl.ds(base, Bp), :] = h_new
        return h_new

    jax.lax.fori_loop(0, L, step, h0_ref[...].astype(jnp.float32))

    # (3) Linear + ReLU head, once, only on the last P timesteps.
    hs_tail = xp_ref[pl.ds((L - P) * Bp, P * Bp), :]
    y = jnp.dot(hs_tail, wlin_ref[...],
                preferred_element_type=jnp.float32) + blin_ref[...]
    out_ref[...] = jnp.maximum(y, jnp.float32(0.0)).astype(out_ref.dtype)


def _round_up(n, m):
    return ((n + m - 1) // m) * m


@functools.partial(jax.jit, static_argnames=("pred_length",))
def rnn_attn_forward(x, h0, w_ih, w_hh, b_ih, b_hh, w_lin, b_lin, pred_length):
    """Forward of RNNAttn.

    x     : (L, B, I)
    h0    : (B, H)        -- hidden_cell[0] squeezed of its num_layers dim
    w_ih  : (H, I)   b_ih : (H,)
    w_hh  : (H, H)   b_hh : (H,)
    w_lin : (O, H)   b_lin: (O,)
    returns predictions[-pred_length:] of shape (pred_length, B, O)
    """
    L, B, I = x.shape
    H = w_hh.shape[0]
    O = w_lin.shape[0]
    P = min(int(pred_length), L)

    # Pad to vreg/MXU-friendly sizes (sublane 8, lane 128).  Zero padding is
    # mathematically inert for this computation.
    Bp = max(_round_up(B, 8), 8)
    Ip = _round_up(I, 128)
    Hp = _round_up(H, 128)
    Op = _round_up(O, 128)

    f32 = jnp.float32
    # Glue: pad, pre-transpose weights, fold the two RNN biases together, and
    # flatten time-major input to a 2-D (L*Bp, Ip) slab for one big matmul.
    x_pad = jnp.zeros((L, Bp, Ip), f32).at[:, :B, :I].set(x.astype(f32))
    x2 = x_pad.reshape(L * Bp, Ip)
    h0p = jnp.zeros((Bp, Hp), f32).at[:B, :H].set(h0.astype(f32))
    wih_t = jnp.zeros((Ip, Hp), f32).at[:I, :H].set(w_ih.T.astype(f32))
    whh_t = jnp.zeros((Hp, Hp), f32).at[:H, :H].set(w_hh.T.astype(f32))
    brnn = jnp.zeros((1, Hp), f32).at[0, :H].set((b_ih + b_hh).astype(f32))
    wlin_t = jnp.zeros((Hp, Op), f32).at[:H, :O].set(w_lin.T.astype(f32))
    blin = jnp.zeros((1, Op), f32).at[0, :O].set(b_lin.astype(f32))

    out2 = pl.pallas_call(
        _rnn_attn_kernel,
        out_shape=jax.ShapeDtypeStruct((P * Bp, Op), f32),
        in_specs=[pl.BlockSpec(memory_space=pltpu.MemorySpace.VMEM)] * 7,
        out_specs=pl.BlockSpec(memory_space=pltpu.MemorySpace.VMEM),
        scratch_shapes=[pltpu.VMEM((L * Bp, Hp), f32)],
    )(x2, h0p, wih_t, whh_t, brnn, wlin_t, blin)

    # Strip padding: (P*Bp, Op) -> (P, B, O).
    return out2.reshape(P, Bp, Op)[:, :B, :O]


def _reference_forward(x, h0, w_ih, w_hh, b_ih, b_hh, w_lin, b_lin, pred_length):
    """Pure-JAX reference matching PyTorch nn.RNN + Linear + ReLU semantics."""
    def step(h, x_t):
        h_new = jnp.tanh(x_t @ w_ih.T + b_ih + h @ w_hh.T + b_hh)
        return h_new, h_new

    _, hs = jax.lax.scan(step, h0, x)            # (L, B, H)
    y = jnp.maximum(hs @ w_lin.T + b_lin, 0.0)   # (L, B, O)
    return y[-pred_length:]


if __name__ == "__main__":
    # Small shapes consistent with the module's forward.
    L, B, I, H, O = 8, 2, 4, 32, 1
    pred_length = 3

    key = jax.random.PRNGKey(0)
    ks = jax.random.split(key, 9)
    bound = 1.0 / np.sqrt(H)   # PyTorch default uniform(-1/sqrt(H), 1/sqrt(H))

    x = jax.random.normal(ks[0], (L, B, I), dtype=jnp.float32)
    # hidden_cell in the PyTorch code is (h0, c0); hidden_cell[0] -> (1, B, H)
    h0_full = jax.random.normal(ks[1], (1, B, H), dtype=jnp.float32)
    h0 = h0_full[0]                                    # (B, H)

    w_ih = jax.random.uniform(ks[2], (H, I), jnp.float32, -bound, bound)
    w_hh = jax.random.uniform(ks[3], (H, H), jnp.float32, -bound, bound)
    b_ih = jax.random.uniform(ks[4], (H,), jnp.float32, -bound, bound)
    b_hh = jax.random.uniform(ks[5], (H,), jnp.float32, -bound, bound)
    w_lin = jax.random.uniform(ks[6], (O, H), jnp.float32, -bound, bound)
    b_lin = jax.random.uniform(ks[7], (O,), jnp.float32, -bound, bound)

    out = rnn_attn_forward(x, h0, w_ih, w_hh, b_ih, b_hh, w_lin, b_lin, pred_length)
    out = jax.block_until_ready(out)

    ref = _reference_forward(x, h0, w_ih, w_hh, b_ih, b_hh, w_lin, b_lin, pred_length)
    ref = jax.block_until_ready(ref)

    assert out.shape == (pred_length, B, O), out.shape
    np.testing.assert_allclose(np.asarray(out), np.asarray(ref), rtol=1e-5, atol=1e-5)

    print("KERNEL_OK")
</pallas_src>

<mosaic_0001>
module attributes {stable_mosaic.version = 11 : i64} {
  func.func @_rnn_attn_kernel(%arg0: memref<64x128xf32, #tpu.memory_space<vmem>>, %arg1: memref<8x128xf32, #tpu.memory_space<vmem>>, %arg2: memref<128x128xf32, #tpu.memory_space<vmem>>, %arg3: memref<128x128xf32, #tpu.memory_space<vmem>>, %arg4: memref<1x128xf32, #tpu.memory_space<vmem>>, %arg5: memref<128x128xf32, #tpu.memory_space<vmem>>, %arg6: memref<1x128xf32, #tpu.memory_space<vmem>>, %arg7: memref<24x128xf32, #tpu.memory_space<vmem>>, %arg8: memref<64x128xf32, #tpu.memory_space<vmem>>) attributes {dimension_semantics = [], scalar_prefetch = 0 : i64, scratch_operands = 1 : i64, tpu.core_type = #tpu.core_type<tc>} {
    %c0 = arith.constant 0 : index
    %c0_0 = arith.constant 0 : index
    %0 = vector.load %arg0[%c0, %c0_0] : memref<64x128xf32, #tpu.memory_space<vmem>>, vector<64x128xf32>
    %c0_1 = arith.constant 0 : index
    %c0_2 = arith.constant 0 : index
    %1 = vector.load %arg2[%c0_1, %c0_2] : memref<128x128xf32, #tpu.memory_space<vmem>>, vector<128x128xf32>
    %cst = arith.constant dense<0.000000e+00> : vector<64x128xf32>
    %2 = tpu.matmul %0, %1, %cst {dimension_numbers = #tpu.dot_dimension_numbers<[1], [0], [0], [1], [0, 0, 1, 1], [], []>} : vector<64x128xf32>, vector<128x128xf32>, vector<64x128xf32> -> vector<64x128xf32>
    %c0_3 = arith.constant 0 : index
    %c0_4 = arith.constant 0 : index
    %3 = vector.load %arg4[%c0_3, %c0_4] : memref<1x128xf32, #tpu.memory_space<vmem>>, vector<1x128xf32>
    %4 = vector.broadcast %3 : vector<1x128xf32> to vector<64x128xf32>
    %5 = arith.addf %2, %4 : vector<64x128xf32>
    %c0_5 = arith.constant 0 : index
    %c0_6 = arith.constant 0 : index
    %6 = vector.load %arg8[%c0_5, %c0_6] : memref<64x128xf32, #tpu.memory_space<vmem>>, vector<64x128xf32>
    tpu.vector_store %arg8[%c0_5, %c0_6], %5 {strides = array<i32>} : memref<64x128xf32, #tpu.memory_space<vmem>>, vector<64x128xf32>,
    %c0_7 = arith.constant 0 : index
    %c0_8 = arith.constant 0 : index
    %7 = vector.load %arg1[%c0_7, %c0_8] : memref<8x128xf32, #tpu.memory_space<vmem>>, vector<8x128xf32>
    %c0_i32 = arith.constant 0 : i32
    %c8_i32 = arith.constant 8 : i32
    %8 = arith.addi %c0_i32, %c8_i32 : i32
    %c1_i32 = arith.constant 1 : i32
    %9 = scf.for %arg9 = %c0_i32 to %8 step %c1_i32 iter_args(%arg10 = %7) -> (vector<8x128xf32>)  : i32 {
      %c8_i32_19 = arith.constant 8 : i32
      %19 = arith.muli %arg9, %c8_i32_19 : i32
      %20 = tpu.assume_multiple %19, 8 : i32
      %21 = arith.index_cast %20 : i32 to index
      %c0_20 = arith.constant 0 : index
      %22 = vector.load %arg8[%21, %c0_20] : memref<64x128xf32, #tpu.memory_space<vmem>>, vector<8x128xf32>
      %c0_21 = arith.constant 0 : index
      %c0_22 = arith.constant 0 : index
      %23 = vector.load %arg3[%c0_21, %c0_22] : memref<128x128xf32, #tpu.memory_space<vmem>>, vector<128x128xf32>
      %cst_23 = arith.constant dense<0.000000e+00> : vector<8x128xf32>
      %24 = tpu.matmul %arg10, %23, %cst_23 {dimension_numbers = #tpu.dot_dimension_numbers<[1], [0], [0], [1], [0, 0, 1, 1], [], []>} : vector<8x128xf32>, vector<128x128xf32>, vector<8x128xf32> -> vector<8x128xf32>
      %25 = arith.addf %22, %24 : vector<8x128xf32>
      %26 = math.tanh %25 : vector<8x128xf32>
      %27 = arith.index_cast %20 : i32 to index
      %c0_24 = arith.constant 0 : index
      %28 = vector.load %arg8[%27, %c0_24] : memref<64x128xf32, #tpu.memory_space<vmem>>, vector<8x128xf32>
      tpu.vector_store %arg8[%27, %c0_24], %26 {strides = array<i32>} : memref<64x128xf32, #tpu.memory_space<vmem>>, vector<8x128xf32>,
      scf.yield %26 : vector<8x128xf32>
    }
    %c8_i32_9 = arith.constant 8 : i32
    %c40 = arith.constant 40 : index
    %c0_10 = arith.constant 0 : index
    %10 = vector.load %arg8[%c40, %c0_10] : memref<64x128xf32, #tpu.memory_space<vmem>>, vector<24x128xf32>
    %c0_11 = arith.constant 0 : index
    %c0_12 = arith.constant 0 : index
    %11 = vector.load %arg5[%c0_11, %c0_12] : memref<128x128xf32, #tpu.memory_space<vmem>>, vector<128x128xf32>
    %cst_13 = arith.constant dense<0.000000e+00> : vector<24x128xf32>
    %12 = tpu.matmul %10, %11, %cst_13 {dimension_numbers = #tpu.dot_dimension_numbers<[1], [0], [0], [1], [0, 0, 1, 1], [], []>} : vector<24x128xf32>, vector<128x128xf32>, vector<24x128xf32> -> vector<24x128xf32>
    %c0_14 = arith.constant 0 : index
    %c0_15 = arith.constant 0 : index
    %13 = vector.load %arg6[%c0_14, %c0_15] : memref<1x128xf32, #tpu.memory_space<vmem>>, vector<1x128xf32>
    %14 = vector.broadcast %13 : vector<1x128xf32> to vector<24x128xf32>
    %15 = arith.addf %12, %14 : vector<24x128xf32>
    %cst_16 = arith.constant 0.000000e+00 : f32
    %16 = vector.broadcast %cst_16 : f32 to vector<24x128xf32>
    %17 = arith.maximumf %15, %16 : vector<24x128xf32>
    %c0_17 = arith.constant 0 : index
    %c0_18 = arith.constant 0 : index
    %18 = vector.load %arg7[%c0_17, %c0_18] : memref<24x128xf32, #tpu.memory_space<vmem>>, vector<24x128xf32>
    tpu.vector_store %arg7[%c0_17, %c0_18], %17 {strides = array<i32>} : memref<24x128xf32, #tpu.memory_space<vmem>>, vector<24x128xf32>,
    return
  }
}

</mosaic_0001>

<llo_original>
// kernel: rnn_attn_forward.1
$region0: #{rnn_attn_forward.1}
  #allocation0 [shape = 'u32[]', space=smem, size = 0x4, offset = 0x4, fixed_abs, tag = 'smem constant byte address 0x4 - core index']
  #allocation1 [shape = 'u32[144,128]{1,0:T(1,128)}', space=vmem, size = 0x12000, scoped, tag = 'internal scratch']
  #allocation2 [shape = 'f32[64,128]{1,0:T(8,128)}', space=vmem, size = 0x8000, scoped, tag = 'scratch operand']
  %s0 = inlined_call_operand.vmem [shape: f32[64,128], index: 0, kind: input, shape index: {}]
  %s1 = inlined_call_operand.vmem [shape: f32[8,128], index: 1, kind: input, shape index: {}]
  %s2 = inlined_call_operand.vmem [shape: f32[128,128], index: 2, kind: input, shape index: {}]
  %s3 = inlined_call_operand.vmem [shape: f32[128,128], index: 3, kind: input, shape index: {}]
  %s4 = inlined_call_operand.vmem [shape: f32[1,128], index: 4, kind: input, shape index: {}]
  %s5 = inlined_call_operand.vmem [shape: f32[128,128], index: 5, kind: input, shape index: {}]
  %s6 = inlined_call_operand.vmem [shape: f32[1,128], index: 6, kind: input, shape index: {}]
  %s7 = inlined_call_operand.vmem [shape: f32[24,128], index: 7, kind: output, shape index: {}]
  %s8 = sld [smem:[#allocation0]]
  $region45: #{rnn_attn_forward.1} parent=0
    _
  %s10 = ssub.s32 1, %s8
  %s11 = scalar_select 0, %s10, %s8
  // Predicated region
  $region2: #{rnn_attn_forward.1} parent=0 // pred_check
    _
  $region3: #{rnn_attn_forward.1} parent=0 // pred_check_branch
    %13 = sbr.rel (0) target = $region5
  $region4: #{rnn_attn_forward.1} parent=0 // pred_region
    _
  $region5: #{rnn_attn_forward.1} parent=0 // pred_fallthru
    _
  // Predicated region
  $region6: #{rnn_attn_forward.1} parent=0 // pred_check
    _
  $region7: #{rnn_attn_forward.1} parent=0 // pred_check_branch
    %15 = sbr.rel (0) target = $region9
  $region8: #{rnn_attn_forward.1} parent=0 // pred_region
    _
  $region9: #{rnn_attn_forward.1} parent=0 // pred_fallthru
    _
  // Predicated region
  $region10: #{rnn_attn_forward.1} parent=0 // pred_check
    _
  $region11: #{rnn_attn_forward.1} parent=0 // pred_check_branch
    %17 = sbr.rel (0) target = $region13
  $region12: #{rnn_attn_forward.1} parent=0 // pred_region
    _
  $region13: #{rnn_attn_forward.1} parent=0 // pred_fallthru
    _
  // Predicated region
  $region14: #{rnn_attn_forward.1} parent=0 // pred_check
    _
  $region15: #{rnn_attn_forward.1} parent=0 // pred_check_branch
    %19 = sbr.rel (0) target = $region17
  $region16: #{rnn_attn_forward.1} parent=0 // pred_region
    _
  $region17: #{rnn_attn_forward.1} parent=0 // pred_fallthru
    _
  // Predicated region
  $region18: #{rnn_attn_forward.1} parent=0 // pred_check
    _
  $region19: #{rnn_attn_forward.1} parent=0 // pred_check_branch
    %21 = sbr.rel (0) target = $region21
  $region20: #{rnn_attn_forward.1} parent=0 // pred_region
    _
  $region21: #{rnn_attn_forward.1} parent=0 // pred_fallthru
    _
  // Predicated region
  $region22: #{rnn_attn_forward.1} parent=0 // pred_check
    _
  $region23: #{rnn_attn_forward.1} parent=0 // pred_check_branch
    %23 = sbr.rel (0) target = $region25
  $region24: #{rnn_attn_forward.1} parent=0 // pred_region
    _
  $region25: #{rnn_attn_forward.1} parent=0 // pred_fallthru
    _
  // Predicated region
  $region26: #{rnn_attn_forward.1} parent=0 // pred_check
    _
  $region27: #{rnn_attn_forward.1} parent=0 // pred_check_branch
    %25 = sbr.rel (0) target = $region29
  $region28: #{rnn_attn_forward.1} parent=0 // pred_region
    _
  $region29: #{rnn_attn_forward.1} parent=0 // pred_fallthru
    _
  %v26 = vld [vmem:[%s0] sm:$0xff]
  %v27 = vld [vmem:[%s0 + $0x8] sm:$0xff]
  %v28 = vld [vmem:[%s0 + $0x10] sm:$0xff]
  %v29 = vld [vmem:[%s0 + $0x18] sm:$0xff]
  %v30 = vld [vmem:[%s0 + $0x20] sm:$0xff]
  %v31 = vld [vmem:[%s0 + $0x28] sm:$0xff]
  %v32 = vld [vmem:[%s0 + $0x30] sm:$0xff]
  %v33 = vld [vmem:[%s0 + $0x38] sm:$0xff]
  %v34 = vld [vmem:[%s2] sm:$0xff]
  %v35 = vld [vmem:[%s2 + $0x8] sm:$0xff]
  %v36 = vld [vmem:[%s2 + $0x10] sm:$0xff]
  %v37 = vld [vmem:[%s2 + $0x18] sm:$0xff]
  %v38 = vld [vmem:[%s2 + $0x20] sm:$0xff]
  %v39 = vld [vmem:[%s2 + $0x28] sm:$0xff]
  %v40 = vld [vmem:[%s2 + $0x30] sm:$0xff]
  %v41 = vld [vmem:[%s2 + $0x38] sm:$0xff]
  %v42 = vld [vmem:[%s2 + $0x40] sm:$0xff]
  %v43 = vld [vmem:[%s2 + $0x48] sm:$0xff]
  %v44 = vld [vmem:[%s2 + $0x50] sm:$0xff]
  %v45 = vld [vmem:[%s2 + $0x58] sm:$0xff]
  %v46 = vld [vmem:[%s2 + $0x60] sm:$0xff]
  %v47 = vld [vmem:[%s2 + $0x68] sm:$0xff]
  %v48 = vld [vmem:[%s2 + $0x70] sm:$0xff]
  %v49 = vld [vmem:[%s2 + $0x78] sm:$0xff]
  %v50 = vld [vmem:[%s4] sm:$0x1]
  %v52 = vlaneseq
  %v53 = vshrl.u32 %v52, 7
  %v54 = vsub.s32 0, %v53
  %v55 = vrot.slane %v50, %v54
  %57 = vmatprep.subr.mxu0 0.0
  %58 = vmatpush1.msra.mxu0 %v34
  %59 = vmatprep.subr.mxu0 0.0
  %60 = vmatpush1.msra.mxu0 %v35
  %61 = vmatprep.subr.mxu0 0.0
  %62 = vmatpush1.msra.mxu0 %v36
  %63 = vmatprep.subr.mxu0 0.0
  %64 = vmatpush1.msra.mxu0 %v37
  %65 = vmatprep.subr.mxu0 0.0
  %66 = vmatpush1.msra.mxu0 %v38
  %67 = vmatprep.subr.mxu0 0.0
  %68 = vmatpush1.msra.mxu0 %v39
  %69 = vmatprep.subr.mxu0 0.0
  %70 = vmatpush1.msra.mxu0 %v40
  %71 = vmatprep.subr.mxu0 0.0
  %72 = vmatpush1.msra.mxu0 %v41
  %73 = vmatprep.subr.mxu0 0.0
  %74 = vmatpush1.msra.mxu0 %v42
  %75 = vmatprep.subr.mxu0 0.0
  %76 = vmatpush1.msra.mxu0 %v43
  %77 = vmatprep.subr.mxu0 0.0
  %78 = vmatpush1.msra.mxu0 %v44
  %79 = vmatprep.subr.mxu0 0.0
  %80 = vmatpush1.msra.mxu0 %v45
  %81 = vmatprep.subr.mxu0 0.0
  %82 = vmatpush1.msra.mxu0 %v46
  %83 = vmatprep.subr.mxu0 0.0
  %84 = vmatpush1.msra.mxu0 %v47
  %85 = vmatprep.subr.mxu0 0.0
  %86 = vmatpush1.msra.mxu0 %v48
  %87 = vmatprep.subr.mxu0 0.0
  %88 = vmatpush1.msra.mxu0 %v49
  %89 = vmatprep.subr.mxu0 0.0
  %90 = vmatpush1.msra.mxu0 0.0
  %91 = vmatprep.subr.mxu0 0.0
  %92 = vmatpush1.msra.mxu0 0.0
  %93 = vmatprep.subr.mxu0 0.0
  %94 = vmatpush1.msra.mxu0 0.0
  %95 = vmatprep.subr.mxu0 0.0
  %96 = vmatpush1.msra.mxu0 0.0
  %97 = vmatprep.subr.mxu0 0.0
  %98 = vmatpush1.msra.mxu0 0.0
  %99 = vmatprep.subr.mxu0 0.0
  %100 = vmatpush1.msra.mxu0 0.0
  %101 = vmatprep.subr.mxu0 0.0
  %102 = vmatpush1.msra.mxu0 0.0
  %103 = vmatprep.subr.mxu0 0.0
  %104 = vmatpush1.msra.mxu0 0.0
  %105 = vmatprep.subr.mxu0 0.0
  %106 = vmatpush1.msra.mxu0 0.0
  %107 = vmatprep.subr.mxu0 0.0
  %108 = vmatpush1.msra.mxu0 0.0
  %109 = vmatprep.subr.mxu0 0.0
  %110 = vmatpush1.msra.mxu0 0.0
  %111 = vmatprep.subr.mxu0 0.0
  %112 = vmatpush1.msra.mxu0 0.0
  %113 = vmatprep.subr.mxu0 0.0
  %114 = vmatpush1.msra.mxu0 0.0
  %115 = vmatprep.subr.mxu0 0.0
  %116 = vmatpush1.msra.mxu0 0.0
  %117 = vmatprep.subr.mxu0 0.0
  %118 = vmatpush1.msra.mxu0 0.0
  %119 = vmatprep.subr.mxu0 0.0
  %120 = vmatpush1.msra.mxu0 0.0
  %121 = vmatprep.mubr.f32.mxu0 0.0
  %122 = vmatmul.mubr.f32.gmra.mrb[0].mxu0 %v26
  %v123 = vpop.f32.mrb[0].mxu0
  %v124 = vadd.f32 %v55, %v123
  %v125 = vpop.f32.mrb[0].mxu0
  %126 = vmatprep.mubr.f32.mxu0 0.0
  %127 = vmatmul.mubr.f32.gmra.mrb[0].mxu0 %v27
  %v128 = vpop.f32.mrb[0].mxu0
  %v129 = vadd.f32 %v55, %v128
  %v130 = vpop.f32.mrb[0].mxu0
  %131 = vmatprep.mubr.f32.mxu0 0.0
  %132 = vmatmul.mubr.f32.gmra.mrb[0].mxu0 %v28
  %v133 = vpop.f32.mrb[0].mxu0
  %v134 = vadd.f32 %v55, %v133
  %v135 = vpop.f32.mrb[0].mxu0
  %136 = vmatprep.mubr.f32.mxu0 0.0
  %137 = vmatmul.mubr.f32.gmra.mrb[0].mxu0 %v29
  %v138 = vpop.f32.mrb[0].mxu0
  %v139 = vadd.f32 %v55, %v138
  %v140 = vpop.f32.mrb[0].mxu0
  %141 = vmatprep.mubr.f32.mxu0 0.0
  %142 = vmatmul.mubr.f32.gmra.mrb[0].mxu0 %v30
  %v143 = vpop.f32.mrb[0].mxu0
  %v144 = vadd.f32 %v55, %v143
  %v145 = vpop.f32.mrb[0].mxu0
  %146 = vmatprep.mubr.f32.mxu0 0.0
  %147 = vmatmul.mubr.f32.gmra.mrb[0].mxu0 %v31
  %v148 = vpop.f32.mrb[0].mxu0
  %v149 = vadd.f32 %v55, %v148
  %v150 = vpop.f32.mrb[0].mxu0
  %151 = vmatprep.mubr.f32.mxu0 0.0
  %152 = vmatmul.mubr.f32.gmra.mrb[0].mxu0 %v32
  %v153 = vpop.f32.mrb[0].mxu0
  %v154 = vadd.f32 %v55, %v153
  %v155 = vpop.f32.mrb[0].mxu0
  %156 = vmatprep.mubr.f32.mxu0 0.0
  %157 = vmatmul.mubr.f32.gmra.mrb[0].mxu0 %v33
  %v158 = vpop.f32.mrb[0].mxu0
  %v159 = vadd.f32 %v55, %v158
  %v160 = vpop.f32.mrb[0].mxu0
  %161 = vdwg.mxu0
  %162 = vst [vmem:[#allocation2] sm:$0xff] %v124
  %163 = vst [vmem:[#allocation2 + $0x8] sm:$0xff] %v129
  %164 = vst [vmem:[#allocation2 + $0x10] sm:$0xff] %v134
  %165 = vst [vmem:[#allocation2 + $0x18] sm:$0xff] %v139
  %166 = vst [vmem:[#allocation2 + $0x20] sm:$0xff] %v144
  %167 = vst [vmem:[#allocation2 + $0x28] sm:$0xff] %v149
  %168 = vst [vmem:[#allocation2 + $0x30] sm:$0xff] %v154
  %169 = vst [vmem:[#allocation2 + $0x38] sm:$0xff] %v159
  %v170 = vld [vmem:[%s1] sm:$0xff]
  loop: start=0, step=1, limit=8
  $region30: #{rnn_attn_forward.1} parent=0 // loop_pre_header
    _
  $region31: #{rnn_attn_forward.1} parent=0 // loop_header
    %s172 = sphi 0, %s176
    %p173 = scmp.ge.s32.totalorder %s172, 8
    %v177 = vphi %v170, %v268
  $region32: #{rnn_attn_forward.1} parent=0 // loop_header_branch
    %175 = sbr.rel (%p173) target = $region36
  $region33: #{rnn_attn_forward.1} parent=0 // loop_body
    %s178 = smul.u32 %s172, 8
    %s179 = scalar_lea.vmem [#allocation2], %s178
    %v180 = vld [vmem:[%s179] sm:$0xff]
    %v181 = vld [vmem:[%s3] sm:$0xff]
    %v182 = vld [vmem:[%s3 + $0x8] sm:$0xff]
    %v183 = vld [vmem:[%s3 + $0x10] sm:$0xff]
    %v184 = vld [vmem:[%s3 + $0x18] sm:$0xff]
    %v185 = vld [vmem:[%s3 + $0x20] sm:$0xff]
    %v186 = vld [vmem:[%s3 + $0x28] sm:$0xff]
    %v187 = vld [vmem:[%s3 + $0x30] sm:$0xff]
    %v188 = vld [vmem:[%s3 + $0x38] sm:$0xff]
    %v189 = vld [vmem:[%s3 + $0x40] sm:$0xff]
    %v190 = vld [vmem:[%s3 + $0x48] sm:$0xff]
    %v191 = vld [vmem:[%s3 + $0x50] sm:$0xff]
    %v192 = vld [vmem:[%s3 + $0x58] sm:$0xff]
    %v193 = vld [vmem:[%s3 + $0x60] sm:$0xff]
    %v194 = vld [vmem:[%s3 + $0x68] sm:$0xff]
    %v195 = vld [vmem:[%s3 + $0x70] sm:$0xff]
    %v196 = vld [vmem:[%s3 + $0x78] sm:$0xff]
    %197 = vmatprep.subr.mxu0 0.0
    %198 = vmatpush1.msra.mxu0 %v181
    %199 = vmatprep.subr.mxu0 0.0
    %200 = vmatpush1.msra.mxu0 %v182
    %201 = vmatprep.subr.mxu0 0.0
    %202 = vmatpush1.msra.mxu0 %v183
    %203 = vmatprep.subr.mxu0 0.0
    %204 = vmatpush1.msra.mxu0 %v184
    %205 = vmatprep.subr.mxu0 0.0
    %206 = vmatpush1.msra.mxu0 %v185
    %207 = vmatprep.subr.mxu0 0.0
    %208 = vmatpush1.msra.mxu0 %v186
    %209 = vmatprep.subr.mxu0 0.0
    %210 = vmatpush1.msra.mxu0 %v187
    %211 = vmatprep.subr.mxu0 0.0
    %212 = vmatpush1.msra.mxu0 %v188
    %213 = vmatprep.subr.mxu0 0.0
    %214 = vmatpush1.msra.mxu0 %v189
    %215 = vmatprep.subr.mxu0 0.0
    %216 = vmatpush1.msra.mxu0 %v190
    %217 = vmatprep.subr.mxu0 0.0
    %218 = vmatpush1.msra.mxu0 %v191
    %219 = vmatprep.subr.mxu0 0.0
    %220 = vmatpush1.msra.mxu0 %v192
    %221 = vmatprep.subr.mxu0 0.0
    %222 = vmatpush1.msra.mxu0 %v193
    %223 = vmatprep.subr.mxu0 0.0
    %224 = vmatpush1.msra.mxu0 %v194
    %225 = vmatprep.subr.mxu0 0.0
    %226 = vmatpush1.msra.mxu0 %v195
    %227 = vmatprep.subr.mxu0 0.0
    %228 = vmatpush1.msra.mxu0 %v196
    %229 = vmatprep.subr.mxu0 0.0
    %230 = vmatpush1.msra.mxu0 0.0
    %231 = vmatprep.subr.mxu0 0.0
    %232 = vmatpush1.msra.mxu0 0.0
    %233 = vmatprep.subr.mxu0 0.0
    %234 = vmatpush1.msra.mxu0 0.0
    %235 = vmatprep.subr.mxu0 0.0
    %236 = vmatpush1.msra.mxu0 0.0
    %237 = vmatprep.subr.mxu0 0.0
    %238 = vmatpush1.msra.mxu0 0.0
    %239 = vmatprep.subr.mxu0 0.0
    %240 = vmatpush1.msra.mxu0 0.0
    %241 = vmatprep.subr.mxu0 0.0
    %242 = vmatpush1.msra.mxu0 0.0
    %243 = vmatprep.subr.mxu0 0.0
    %244 = vmatpush1.msra.mxu0 0.0
    %245 = vmatprep.subr.mxu0 0.0
    %246 = vmatpush1.msra.mxu0 0.0
    %247 = vmatprep.subr.mxu0 0.0
    %248 = vmatpush1.msra.mxu0 0.0
    %249 = vmatprep.subr.mxu0 0.0
    %250 = vmatpush1.msra.mxu0 0.0
    %251 = vmatprep.subr.mxu0 0.0
    %252 = vmatpush1.msra.mxu0 0.0
    %253 = vmatprep.subr.mxu0 0.0
    %254 = vmatpush1.msra.mxu0 0.0
    %255 = vmatprep.subr.mxu0 0.0
    %256 = vmatpush1.msra.mxu0 0.0
    %257 = vmatprep.subr.mxu0 0.0
    %258 = vmatpush1.msra.mxu0 0.0
    %259 = vmatprep.subr.mxu0 0.0
    %260 = vmatpush1.msra.mxu0 0.0
    %261 = vmatprep.mubr.f32.mxu0 0.0
    %262 = vmatmul.mubr.f32.gmra.mrb[0].mxu0 %v177
    %v263 = vpop.f32.mrb[0].mxu0
    %v264 = vadd.f32 0.0, %v263
    %v265 = vpop.f32.mrb[0].mxu0
    %266 = vdwg.mxu0
    %v267 = vadd.f32 %v180, %v264
    %v268 = vtanh.pop %v267
    %269 = vst [vmem:[%s179] sm:$0xff] %v268
  $region34: #{rnn_attn_forward.1} parent=0 // loop_footer
    %s176 = sadd.s32 1, %s172
  $region35: #{rnn_attn_forward.1} parent=0 // loop_footer_branch
    %171 = sbr.rel target = $region31
  $region36: #{rnn_attn_forward.1} parent=0 // loop_exit
    _
  %v270 = vld [vmem:[#allocation2 + $0x28] sm:$0xff]
  %v271 = vld [vmem:[#allocation2 + $0x30] sm:$0xff]
  %v272 = vld [vmem:[#allocation2 + $0x38] sm:$0xff]
  %v273 = vld [vmem:[%s5] sm:$0xff]
  %v274 = vld [vmem:[%s5 + $0x8] sm:$0xff]
  %v275 = vld [vmem:[%s5 + $0x10] sm:$0xff]
  %v276 = vld [vmem:[%s5 + $0x18] sm:$0xff]
  %v277 = vld [vmem:[%s5 + $0x20] sm:$0xff]
  %v278 = vld [vmem:[%s5 + $0x28] sm:$0xff]
  %v279 = vld [vmem:[%s5 + $0x30] sm:$0xff]
  %v280 = vld [vmem:[%s5 + $0x38] sm:$0xff]
  %v281 = vld [vmem:[%s5 + $0x40] sm:$0xff]
  %v282 = vld [vmem:[%s5 + $0x48] sm:$0xff]
  %v283 = vld [vmem:[%s5 + $0x50] sm:$0xff]
  %v284 = vld [vmem:[%s5 + $0x58] sm:$0xff]
  %v285 = vld [vmem:[%s5 + $0x60] sm:$0xff]
  %v286 = vld [vmem:[%s5 + $0x68] sm:$0xff]
  %v287 = vld [vmem:[%s5 + $0x70] sm:$0xff]
  %v288 = vld [vmem:[%s5 + $0x78] sm:$0xff]
  %v289 = vld [vmem:[%s6] sm:$0x1]
  %v291 = vlaneseq
  %v292 = vshrl.u32 %v291, 7
  %v293 = vsub.s32 0, %v292
  %v294 = vrot.slane %v289, %v293
  %296 = vmatprep.subr.mxu0 0.0
  %297 = vmatpush1.msra.mxu0 %v273
  %298 = vmatprep.subr.mxu0 0.0
  %299 = vmatpush1.msra.mxu0 %v274
  %300 = vmatprep.subr.mxu0 0.0
  %301 = vmatpush1.msra.mxu0 %v275
  %302 = vmatprep.subr.mxu0 0.0
  %303 = vmatpush1.msra.mxu0 %v276
  %304 = vmatprep.subr.mxu0 0.0
  %305 = vmatpush1.msra.mxu0 %v277
  %306 = vmatprep.subr.mxu0 0.0
  %307 = vmatpush1.msra.mxu0 %v278
  %308 = vmatprep.subr.mxu0 0.0
  %309 = vmatpush1.msra.mxu0 %v279
  %310 = vmatprep.subr.mxu0 0.0
  %311 = vmatpush1.msra.mxu0 %v280
  %312 = vmatprep.subr.mxu0 0.0
  %313 = vmatpush1.msra.mxu0 %v281
  %314 = vmatprep.subr.mxu0 0.0
  %315 = vmatpush1.msra.mxu0 %v282
  %316 = vmatprep.subr.mxu0 0.0
  %317 = vmatpush1.msra.mxu0 %v283
  %318 = vmatprep.subr.mxu0 0.0
  %319 = vmatpush1.msra.mxu0 %v284
  %320 = vmatprep.subr.mxu0 0.0
  %321 = vmatpush1.msra.mxu0 %v285
  %322 = vmatprep.subr.mxu0 0.0
  %323 = vmatpush1.msra.mxu0 %v286
  %324 = vmatprep.subr.mxu0 0.0
  %325 = vmatpush1.msra.mxu0 %v287
  %326 = vmatprep.subr.mxu0 0.0
  %327 = vmatpush1.msra.mxu0 %v288
  %328 = vmatprep.subr.mxu0 0.0
  %329 = vmatpush1.msra.mxu0 0.0
  %330 = vmatprep.subr.mxu0 0.0
  %331 = vmatpush1.msra.mxu0 0.0
  %332 = vmatprep.subr.mxu0 0.0
  %333 = vmatpush1.msra.mxu0 0.0
  %334 = vmatprep.subr.mxu0 0.0
  %335 = vmatpush1.msra.mxu0 0.0
  %336 = vmatprep.subr.mxu0 0.0
  %337 = vmatpush1.msra.mxu0 0.0
  %338 = vmatprep.subr.mxu0 0.0
  %339 = vmatpush1.msra.mxu0 0.0
  %340 = vmatprep.subr.mxu0 0.0
  %341 = vmatpush1.msra.mxu0 0.0
  %342 = vmatprep.subr.mxu0 0.0
  %343 = vmatpush1.msra.mxu0 0.0
  %344 = vmatprep.subr.mxu0 0.0
  %345 = vmatpush1.msra.mxu0 0.0
  %346 = vmatprep.subr.mxu0 0.0
  %347 = vmatpush1.msra.mxu0 0.0
  %348 = vmatprep.subr.mxu0 0.0
  %349 = vmatpush1.msra.mxu0 0.0
  %350 = vmatprep.subr.mxu0 0.0
  %351 = vmatpush1.msra.mxu0 0.0
  %352 = vmatprep.subr.mxu0 0.0
  %353 = vmatpush1.msra.mxu0 0.0
  %354 = vmatprep.subr.mxu0 0.0
  %355 = vmatpush1.msra.mxu0 0.0
  %356 = vmatprep.subr.mxu0 0.0
  %357 = vmatpush1.msra.mxu0 0.0
  %358 = vmatprep.subr.mxu0 0.0
  %359 = vmatpush1.msra.mxu0 0.0
  %360 = vmatprep.mubr.f32.mxu0 0.0
  %361 = vmatmul.mubr.f32.gmra.mrb[0].mxu0 %v270
  %v362 = vpop.f32.mrb[0].mxu0
  %v363 = vadd.f32 %v294, %v362
  %v364 = vpop.f32.mrb[0].mxu0
  %365 = vmatprep.mubr.f32.mxu0 0.0
  %366 = vmatmul.mubr.f32.gmra.mrb[0].mxu0 %v271
  %v367 = vpop.f32.mrb[0].mxu0
  %v368 = vadd.f32 %v294, %v367
  %v369 = vpop.f32.mrb[0].mxu0
  %370 = vmatprep.mubr.f32.mxu0 0.0
  %371 = vmatmul.mubr.f32.gmra.mrb[0].mxu0 %v272
  %v372 = vpop.f32.mrb[0].mxu0
  %v373 = vadd.f32 %v294, %v372
  %v374 = vpop.f32.mrb[0].mxu0
  %375 = vdwg.mxu0
  %v376 = vmax.f32 %v363, 0.0
  %v377 = vmax.f32 %v368, 0.0
  %v378 = vmax.f32 %v373, 0.0
  %379 = vst [vmem:[%s7] sm:$0xff] %v376
  %380 = vst [vmem:[%s7 + $0x8] sm:$0xff] %v377
  %381 = vst [vmem:[%s7 + $0x10] sm:$0xff] %v378
  // Predicated region
  $region37: #{rnn_attn_forward.1} parent=0 // pred_check
    _
  $region38: #{rnn_attn_forward.1} parent=0 // pred_check_branch
    %383 = sbr.rel (0) target = $region40
  $region39: #{rnn_attn_forward.1} parent=0 // pred_region
    _
  $region40: #{rnn_attn_forward.1} parent=0 // pred_fallthru
    _
  // Predicated region
  $region41: #{rnn_attn_forward.1} parent=0 // pred_check
    _
  $region42: #{rnn_attn_forward.1} parent=0 // pred_check_branch
    %385 = sbr.rel (0) target = $region44
  $region43: #{rnn_attn_forward.1} parent=0 // pred_region
    _
  $region44: #{rnn_attn_forward.1} parent=0 // pred_fallthru
    _

</llo_original>
